<compile_context>
chip_gen: v7x
topology: tpu7x:2x2x1
jax: 0.10.0
libtpu: 0.0.40
codegen_flags: <defaults>
</compile_context>

<pallas_src>
import jax
import jax.numpy as jnp
from jax.experimental import pallas as pl
from jax.experimental.pallas import tpu as pltpu


def _round_up(x, m):
    return ((x + m - 1) // m) * m


def _sublane(dtype):
    # f32 -> 8, bf16/f16 -> 16, int8/fp8 -> 32 (sub-32-bit packs along sublanes).
    return 8 * (4 // jnp.dtype(dtype).itemsize)


def _sgf_kernel(x_ref, w_ref, s_ref, o_ref):
    # x: (tv, g*2C); each 2C-wide lane block is one original row interleaved
    # as [r0, i0, r1, i1, ...].
    x = x_ref[...]
    # Fused "complex" linear on the MXU (block-diagonal over the g folded
    # rows): within each block, y[:, 2c] = Br_c and y[:, 2c+1] = Bi_c.
    y = jnp.dot(x, w_ref[...], preferred_element_type=jnp.float32)
    z = x.astype(jnp.float32) * y                        # [r*Br, i*Bi, ...]
    # Pair-sum adjacent lanes with a 0/1 selector matmul -> per-channel dots.
    dots = jnp.dot(z, s_ref[...], preferred_element_type=jnp.float32)
    o_ref[...] = jnp.tanh(dots).astype(o_ref.dtype)


def spatial_gradient_features(vectors, w_re, w_im, *, tv=None, out_dtype=None,
                              target_lanes=256,
                              vmem_budget_bytes=10 * 1024 * 1024):
    """vectors: (V, C, 2); w_re, w_im: (C, C) nn.Linear weights (out, in).

    For the with_gradient_rotations=False variant, pass w_im = zeros.
    """
    V, C, two = vectors.shape
    assert two == 2
    x_dtype = vectors.dtype
    out_dtype = x_dtype if out_dtype is None else jnp.dtype(out_dtype)

    # ---- lane folding factor g (pack g original rows per kernel row) -------
    g = 1
    if 2 * C < target_lanes:
        g = max(1, target_lanes // (2 * C))
        while g > 1 and V % g:           # g must divide V for the free reshape
            g -= 1
    Vf = V // g
    lanes_in = g * 2 * C
    lanes_out = g * C

    # Free row-major reshape: (V, C, 2) -> (Vf, g*2C). No HBM copy, no pad.
    x = vectors.reshape(Vf, lanes_in)

    # ---- row-tile size (in folded rows) -------------------------------------
    sub = _sublane(x_dtype)
    per_row = 2 * (lanes_in * jnp.dtype(x_dtype).itemsize
                   + lanes_out * out_dtype.itemsize)      # double-buffered
    if tv is None:
        tv = max(sub, (vmem_budget_bytes // per_row) // sub * sub)
        tv = min(tv, _round_up(Vf, sub))
        # Keep at least 2 grid steps when there is enough work so the V axis
        # can shard across v7x's two TensorCores.
        if pl.cdiv(Vf, tv) < 2 and Vf >= 2 * sub:
            tv = _round_up(pl.cdiv(Vf, 2), sub)
    tv = max(sub, _round_up(tv, sub))
    grid = (pl.cdiv(Vf, tv),)     # ragged last block; OOB writes are masked

    # ---- fused interleaved weight + pair-sum selector -----------------------
    # W_int (2C, 2C) such that x_int @ W_int = [Br0, Bi0, Br1, Bi1, ...]:
    #   W_int[2k,   2c] =  W_re[c,k]   W_int[2k,   2c+1] = W_im[c,k]
    #   W_int[2k+1, 2c] = -W_im[c,k]   W_int[2k+1, 2c+1] = W_re[c,k]
    wre_t = w_re.T.astype(jnp.float32)
    wim_t = w_im.T.astype(jnp.float32)
    w_int = jnp.stack(
        [jnp.stack([wre_t, wim_t], axis=-1),      # rows 2k   (xr contribution)
         jnp.stack([-wim_t, wre_t], axis=-1)],    # rows 2k+1 (xi contribution)
        axis=1,
    ).reshape(2 * C, 2 * C)
    # Selector S (2C, C): S[2c, c] = S[2c+1, c] = 1  ->  z @ S sums lane pairs.
    sel = jnp.repeat(jnp.eye(C, dtype=jnp.float32), 2, axis=0)
    if g > 1:
        eye_g = jnp.eye(g, dtype=jnp.float32)
        w_int = jnp.kron(eye_g, w_int)            # (g*2C, g*2C) block-diagonal
        sel = jnp.kron(eye_g, sel)                # (g*2C, g*C)  block-diagonal
    w_int = w_int.astype(x_dtype)                 # native-rate MXU if bf16 in

    out = pl.pallas_call(
        _sgf_kernel,
        out_shape=jax.ShapeDtypeStruct((Vf, lanes_out), out_dtype),
        grid_spec=pl.GridSpec(
            grid=grid,
            in_specs=[
                pl.BlockSpec((tv, lanes_in), lambda i: (i, 0)),        # x tile
                pl.BlockSpec((lanes_in, lanes_in), lambda i: (0, 0)),  # weight (resident)
                pl.BlockSpec((lanes_in, lanes_out), lambda i: (0, 0)), # selector (resident)
            ],
            out_specs=pl.BlockSpec((tv, lanes_out), lambda i: (i, 0)),
        ),
        compiler_params=pltpu.CompilerParams(
            dimension_semantics=("parallel",)),
    )(x, w_int, sel)

    # Free row-major reshape back: (Vf, g*C) -> (V, C).
    return out.reshape(V, C)


def _reference(vectors, w_re, w_im):
    xr = vectors[..., 0]
    xi = vectors[..., 1]
    br = xr @ w_re.T - xi @ w_im.T
    bi = xi @ w_re.T + xr @ w_im.T
    return jnp.tanh(xr * br + xi * bi)


if __name__ == "__main__":
    C = 32
    key = jax.random.PRNGKey(0)
    k_vec, k_vec2, k_re, k_im = jax.random.split(key, 4)

    # deterministic "learned" weights (nn.Linear weight shape: (C_out, C_in))
    bound = 1.0 / jnp.sqrt(C)
    w_re = jax.random.uniform(k_re, (C, C), jnp.float32, -bound, bound)
    w_im = jax.random.uniform(k_im, (C, C), jnp.float32, -bound, bound)
    w_zero = jnp.zeros_like(w_im)

    # Case 1: V divisible by the fold factor (even tiles).
    v1 = jax.random.normal(k_vec, (64, C, 2), dtype=jnp.float32)
    out1 = jax.block_until_ready(spatial_gradient_features(v1, w_re, w_im))
    assert out1.shape == (64, C)
    assert jnp.allclose(out1, _reference(v1, w_re, w_im), atol=1e-5, rtol=1e-5)

    # Case 2: V not a multiple of the tile size (exercises the ragged last
    # block / masked-write path that replaced the jnp.pad).
    v2 = jax.random.normal(k_vec2, (100, C, 2), dtype=jnp.float32)
    out2 = jax.block_until_ready(spatial_gradient_features(v2, w_re, w_im))
    assert out2.shape == (100, C)
    assert jnp.allclose(out2, _reference(v2, w_re, w_im), atol=1e-5, rtol=1e-5)

    # Case 3: with_gradient_rotations=False (W_im == 0).
    out3 = jax.block_until_ready(spatial_gradient_features(v1, w_re, w_zero))
    assert jnp.allclose(out3, _reference(v1, w_re, w_zero), atol=1e-5, rtol=1e-5)

    print("KERNEL_OK")
</pallas_src>

<mosaic_0001>
module attributes {stable_mosaic.version = 11 : i64} {
  func.func @_sgf_kernel(%arg0: i32, %arg1: memref<8x256xf32, #tpu.memory_space<vmem>>, %arg2: memref<256x256xf32, #tpu.memory_space<vmem>>, %arg3: memref<256x128xf32, #tpu.memory_space<vmem>>, %arg4: memref<8x128xf32, #tpu.memory_space<vmem>>) attributes {dimension_semantics = [#tpu.dimension_semantics<parallel>], iteration_bounds = array<i64: 2>, scalar_prefetch = 0 : i64, scratch_operands = 0 : i64, tpu.core_type = #tpu.core_type<tc>, window_params = [{transform_indices = @transform_0, window_bounds = array<i64: 8, 256>}, {pipeline_mode = #tpu.pipeline_mode<synchronous>, transform_indices = @transform_1, window_bounds = array<i64: 256, 256>}, {pipeline_mode = #tpu.pipeline_mode<synchronous>, transform_indices = @transform_2, window_bounds = array<i64: 256, 128>}, {transform_indices = @transform_3, window_bounds = array<i64: 8, 128>}]} {
    %c0 = arith.constant 0 : index
    %c0_0 = arith.constant 0 : index
    %0 = vector.load %arg1[%c0, %c0_0] : memref<8x256xf32, #tpu.memory_space<vmem>>, vector<8x256xf32>
    %c0_1 = arith.constant 0 : index
    %c0_2 = arith.constant 0 : index
    %1 = vector.load %arg2[%c0_1, %c0_2] : memref<256x256xf32, #tpu.memory_space<vmem>>, vector<256x256xf32>
    %cst = arith.constant dense<0.000000e+00> : vector<8x256xf32>
    %2 = tpu.matmul %0, %1, %cst {dimension_numbers = #tpu.dot_dimension_numbers<[1], [0], [0], [1], [0, 0, 1, 1], [], []>} : vector<8x256xf32>, vector<256x256xf32>, vector<8x256xf32> -> vector<8x256xf32>
    %3 = arith.mulf %0, %2 : vector<8x256xf32>
    %c0_3 = arith.constant 0 : index
    %c0_4 = arith.constant 0 : index
    %4 = vector.load %arg3[%c0_3, %c0_4] : memref<256x128xf32, #tpu.memory_space<vmem>>, vector<256x128xf32>
    %cst_5 = arith.constant dense<0.000000e+00> : vector<8x128xf32>
    %5 = tpu.matmul %3, %4, %cst_5 {dimension_numbers = #tpu.dot_dimension_numbers<[1], [0], [0], [1], [0, 0, 1, 1], [], []>} : vector<8x256xf32>, vector<256x128xf32>, vector<8x128xf32> -> vector<8x128xf32>
    %6 = math.tanh %5 : vector<8x128xf32>
    %c0_6 = arith.constant 0 : index
    %c0_7 = arith.constant 0 : index
    %7 = vector.load %arg4[%c0_6, %c0_7] : memref<8x128xf32, #tpu.memory_space<vmem>>, vector<8x128xf32>
    tpu.vector_store %arg4[%c0_6, %c0_7], %6 {strides = array<i32>} : memref<8x128xf32, #tpu.memory_space<vmem>>, vector<8x128xf32>,
    return
  }
  func.func @transform_0(%arg0: i32) -> (i32, i32) {
    %c0_i32 = arith.constant 0 : i32
    %c0_i32_0 = arith.constant 0 : i32
    return %arg0, %c0_i32 : i32, i32
  }
  func.func @transform_1(%arg0: i32) -> (i32, i32) {
    %c0_i32 = arith.constant 0 : i32
    %c0_i32_0 = arith.constant 0 : i32
    %c0_i32_1 = arith.constant 0 : i32
    return %c0_i32, %c0_i32_0 : i32, i32
  }
  func.func @transform_2(%arg0: i32) -> (i32, i32) {
    %c0_i32 = arith.constant 0 : i32
    %c0_i32_0 = arith.constant 0 : i32
    %c0_i32_1 = arith.constant 0 : i32
    return %c0_i32, %c0_i32_0 : i32, i32
  }
  func.func @transform_3(%arg0: i32) -> (i32, i32) {
    %c0_i32 = arith.constant 0 : i32
    %c0_i32_0 = arith.constant 0 : i32
    return %arg0, %c0_i32 : i32, i32
  }
}

</mosaic_0001>

<llo_original>
// kernel: tpu_custom_call.1
$region0: #{tpu_custom_call.1}
  #allocation0 [shape = 'u32[]', space=smem, size = 0x4, offset = 0x4, fixed_abs, tag = 'smem constant byte address 0x4 - core index']
  #allocation1 [shape = 'u32[144,128]{1,0:T(1,128)}', space=vmem, size = 0x12000, scoped, tag = 'internal scratch']
  %s0 = inlined_call_operand.hbm [shape: f32[16,256], index: 0, kind: input, shape index: {}]
  %s1 = inlined_call_operand.hbm [shape: f32[256,256], index: 1, kind: input, shape index: {}]
  %s2 = inlined_call_operand.hbm [shape: f32[256,128], index: 2, kind: input, shape index: {}]
  %s3 = inlined_call_operand.hbm [shape: f32[16,128], index: 3, kind: output, shape index: {}]
  %s4 = sld [smem:[#allocation0]]
  $region57: #{tpu_custom_call.1} parent=0
    _
  %s6 = ssub.s32 1, %s4
  %s7 = scalar_select 0, %s6, %s4
  $region1: #{tpu_custom_call.1} parent=0
    #allocation2 [shape = 'u8[16384]{0}', space=vmem, size = 0x4000, scoped, tag = 'input window, operand 0']
    #allocation3 [shape = 's32[2]{0}', space=sflag, size = 0x8, scoped, tag = 'scoped memory for tpu_custom_call.1']
    #allocation4 [shape = 's32[2]{0}', space=sflag, size = 0x8, scoped, tag = 'scoped memory for tpu_custom_call.1']
    #allocation5 [shape = 'u8[262144]{0}', space=vmem, size = 0x40000, scoped, tag = 'input window, operand 1, single buffered']
    #allocation6 [shape = 's32[1]{0}', space=sflag, size = 0x4, scoped, tag = 'scoped memory for tpu_custom_call.1']
    #allocation7 [shape = 'u8[131072]{0}', space=vmem, size = 0x20000, scoped, tag = 'input window, operand 2, single buffered']
    #allocation8 [shape = 'u8[8192]{0}', space=vmem, size = 0x2000, scoped, tag = 'output window, operand 0']
    %8 = vsyncpa [#allocation3], 0
    %s9 = scalar_lea.sflag [#allocation3], 1
    %10 = vsyncpa %s9, 0
    %11 = vsyncpa [#allocation6], 0
    %12 = vsyncpa [#allocation4], 0
    %s13 = scalar_lea.sflag [#allocation4], 1
    %14 = vsyncpa %s13, 0
    loop: start=0, step=1, limit=4
    $region2: #{tpu_custom_call.1} parent=1 // loop_pre_header
      _
    $region3: #{tpu_custom_call.1} parent=1 // loop_header
      %s16 = sphi 0, %s20
      %p17 = scmp.ge.s32.totalorder %s16, 4
      %s26 = sphi 0, %s28
      %s29 = sphi 0, %s26
      %s30 = sphi 0, %s29
      %s46 = sphi 0, %s30
      %s50 = sphi 0, %s50
      %s52 = sphi 0, %s50
      %s53 = sphi 0, %s52
      %s67 = sphi 0, %s53
      %s71 = sphi 0, %s71
      %s73 = sphi 0, %s71
      %s74 = sphi 0, %s73
      %s88 = sphi 0, %s74
      %s94 = sphi 0, %s96
      %s97 = sphi 0, %s94
      %s98 = sphi 0, %s97
      %s114 = sphi 0, %s98
    $region4: #{tpu_custom_call.1} parent=1 // loop_header_branch
      %19 = sbr.rel (%p17) target = $region8
    $region5: #{tpu_custom_call.1} parent=1 // loop_body
      %s21 = ssub.s32 %s16, 1
      %s22 = ssub.s32 %s16, 2
      %s23 = sadd.s32 %s16, 1
      %s24 = ssub.s32 %s16, %s23
      %p25 = scmp.eq.s32.totalorder %s24, 0
      %s27 = sadd.s32 %s26, 1
      %s28 = scalar_select %p25, %s26, %s27
      %p31 = pneg %p25
      %p32 = scmp.eq.s32.totalorder %s16, 1
      %p33 = por %p31, %p32
      %p34 = scmp.ne.s32.totalorder %s26, %s29
      %p35 = scmp.eq.s32.totalorder %s16, 0
      %p36 = por %p34, %p35
      %p37 = scmp.ne.s32.totalorder %s26, %s29
      %p38 = scmp.eq.s32.totalorder %s21, 1
      %p39 = por %p37, %p38
      %p40 = scmp.ne.s32.totalorder %s29, %s30
      %p41 = scmp.eq.s32.totalorder %s21, 0
      %p42 = por %p40, %p41
      %p43 = scmp.ne.s32.totalorder %s29, %s30
      %p44 = scmp.eq.s32.totalorder %s22, 1
      %p45 = por %p43, %p44
      %p47 = scmp.ne.s32.totalorder %s30, %s46
      %p48 = scmp.eq.s32.totalorder %s22, 0
      %p49 = por %p47, %p48
      %s51 = sadd.s32 %s50, 1
      %p54 = scmp.eq.s32.totalorder %s16, 1
      %p55 = scmp.ne.s32.totalorder %s50, %s52
      %p56 = scmp.eq.s32.totalorder %s16, 0
      %p57 = por %p55, %p56
      %p58 = scmp.ne.s32.totalorder %s50, %s52
      %p59 = scmp.eq.s32.totalorder %s21, 1
      %p60 = por %p58, %p59
      %p61 = scmp.ne.s32.totalorder %s52, %s53
      %p62 = scmp.eq.s32.totalorder %s21, 0
      %p63 = por %p61, %p62
      %p64 = scmp.ne.s32.totalorder %s52, %s53
      %p65 = scmp.eq.s32.totalorder %s22, 1
      %p66 = por %p64, %p65
      %p68 = scmp.ne.s32.totalorder %s53, %s67
      %p69 = scmp.eq.s32.totalorder %s22, 0
      %p70 = por %p68, %p69
      %s72 = sadd.s32 %s71, 1
      %p75 = scmp.eq.s32.totalorder %s16, 1
      %p76 = scmp.ne.s32.totalorder %s71, %s73
      %p77 = scmp.eq.s32.totalorder %s16, 0
      %p78 = por %p76, %p77
      %p79 = scmp.ne.s32.totalorder %s71, %s73
      %p80 = scmp.eq.s32.totalorder %s21, 1
      %p81 = por %p79, %p80
      %p82 = scmp.ne.s32.totalorder %s73, %s74
      %p83 = scmp.eq.s32.totalorder %s21, 0
      %p84 = por %p82, %p83
      %p85 = scmp.ne.s32.totalorder %s73, %s74
      %p86 = scmp.eq.s32.totalorder %s22, 1
      %p87 = por %p85, %p86
      %p89 = scmp.ne.s32.totalorder %s74, %s88
      %p90 = scmp.eq.s32.totalorder %s22, 0
      %p91 = por %p89, %p90
      %s92 = ssub.s32 %s16, %s23
      %p93 = scmp.eq.s32.totalorder %s92, 0
      %s95 = sadd.s32 %s94, 1
      %s96 = scalar_select %p93, %s94, %s95
      %p99 = pneg %p93
      %p100 = scmp.eq.s32.totalorder %s16, 1
      %p101 = por %p99, %p100
      %p102 = scmp.ne.s32.totalorder %s94, %s97
      %p103 = scmp.eq.s32.totalorder %s16, 0
      %p104 = por %p102, %p103
      %p105 = scmp.ne.s32.totalorder %s94, %s97
      %p106 = scmp.eq.s32.totalorder %s21, 1
      %p107 = por %p105, %p106
      %p108 = scmp.ne.s32.totalorder %s97, %s98
      %p109 = scmp.eq.s32.totalorder %s21, 0
      %p110 = por %p108, %p109
      %p111 = scmp.ne.s32.totalorder %s97, %s98
      %p112 = scmp.eq.s32.totalorder %s22, 1
      %p113 = por %p111, %p112
      %p115 = scmp.ne.s32.totalorder %s98, %s114
      %p116 = scmp.eq.s32.totalorder %s22, 0
      %p117 = por %p115, %p116
      %p118 = scmp.le.s32.totalorder 1, %s16
      %p119 = scmp.lt.s32.totalorder %s16, 3
      %p120 = pnand %p118, %p119
      %p121 = pneg %p120
      // Predicated region
      $region9: #{tpu_custom_call.1} parent=5 // pred_check
        _
      $region10: #{tpu_custom_call.1} parent=5 // pred_check_branch
        %123 = sbr.rel (%p120) target = $region12
      $region11: #{tpu_custom_call.1} parent=5 // pred_region
        %s124 = ssub.s32 %s16, 1
        // Predicated region
        $region13: #{tpu_custom_call.1} parent=11 // pred_check
          %p125 = pneg %p63
        $region14: #{tpu_custom_call.1} parent=11 // pred_check_branch
          %127 = sbr.rel (%p125) target = $region16
        $region15: #{tpu_custom_call.1} parent=11 // pred_region
          %s129 = ssub.s32 8192, 8192
          %130 = vsyncadd [#allocation6], %s129
          %s131 = sshll.u32 [#allocation5], 4
          %s132 = int_to_ptr.vmem [resolvable:$true] %s131
          %137 = dma.hbm_to_vmem [thread:$0]  %s1, 8192, %s132, [#allocation6], 256, 256, 16
        $region16: #{tpu_custom_call.1} parent=11 // pred_fallthru
          _
        // Predicated region
        $region17: #{tpu_custom_call.1} parent=11 // pred_check
          %p138 = pneg %p84
        $region18: #{tpu_custom_call.1} parent=11 // pred_check_branch
          %140 = sbr.rel (%p138) target = $region20
        $region19: #{tpu_custom_call.1} parent=11 // pred_region
          %s142 = ssub.s32 4096, 4096
          %143 = vsyncadd [#allocation6], %s142
          %s144 = sshll.u32 [#allocation7], 4
          %s145 = int_to_ptr.vmem [resolvable:$true] %s144
          %150 = dma.hbm_to_vmem [thread:$0]  %s2, 4096, %s145, [#allocation6], 128, 128, 8
        $region20: #{tpu_custom_call.1} parent=11 // pred_fallthru
          _
      $region12: #{tpu_custom_call.1} parent=5 // pred_fallthru
        _
      %p151 = scmp.lt.s32.totalorder %s16, 2
      // Predicated region
      $region21: #{tpu_custom_call.1} parent=5 // pred_check
        %p152 = pneg %p151
      $region22: #{tpu_custom_call.1} parent=5 // pred_check_branch
        %154 = sbr.rel (%p152) target = $region24
      $region23: #{tpu_custom_call.1} parent=5 // pred_region
        // Predicated region
        $region25: #{tpu_custom_call.1} parent=23 // pred_check
          %p155 = pneg %p36
        $region26: #{tpu_custom_call.1} parent=23 // pred_check_branch
          %157 = sbr.rel (%p155) target = $region28
        $region27: #{tpu_custom_call.1} parent=23 // pred_region
          %s158 = sand.u32 %s26, 1
          %s159 = scalar_lea.sflag [#allocation3], %s158
          %s160 = sand.u32 %s26, 1
          %s161 = smul.addr %s160, 16
          %s162 = scalar_lea.vmem [#allocation2], %s161
          %s164 = ssub.s32 256, 256
          %165 = vsyncadd %s159, %s164
          %s166 = smul.addr %s16, 2
          %s167 = smul.addr %s166, 128
          %s168 = scalar_lea.hbm %s0, %s167
          %s170 = sshll.u32 %s162, 4
          %s171 = int_to_ptr.vmem [resolvable:$true] %s170
          %173 = dma.hbm_to_vmem [thread:$0]  %s168, 256, %s171, %s159
        $region28: #{tpu_custom_call.1} parent=23 // pred_fallthru
          _
      $region24: #{tpu_custom_call.1} parent=5 // pred_fallthru
        _
      %p174 = scmp.le.s32.totalorder 1, %s16
      %p175 = scmp.lt.s32.totalorder %s16, 3
      %p176 = pnand %p174, %p175
      %p177 = pneg %p176
      // Predicated region
      $region29: #{tpu_custom_call.1} parent=5 // pred_check
        _
      $region30: #{tpu_custom_call.1} parent=5 // pred_check_branch
        %179 = sbr.rel (%p176) target = $region32
      $region31: #{tpu_custom_call.1} parent=5 // pred_region
        %s180 = ssub.s32 %s16, 1
        %s181 = sand.u32 %s29, 1
        %s182 = scalar_lea.sflag [#allocation3], %s181
        %s183 = sand.u32 %s29, 1
        %s184 = smul.addr %s183, 16
        %s185 = scalar_lea.vmem [#allocation2], %s184
        // Predicated region
        $region33: #{tpu_custom_call.1} parent=31 // pred_check
          %p186 = pneg %p42
        $region34: #{tpu_custom_call.1} parent=31 // pred_check_branch
          %188 = sbr.rel (%p186) target = $region36
        $region35: #{tpu_custom_call.1} parent=31 // pred_region
          %189 = dma.done %s182, 256
        $region36: #{tpu_custom_call.1} parent=31 // pred_fallthru
          _
        // Predicated region
        $region37: #{tpu_custom_call.1} parent=31 // pred_check
          %p190 = pneg %p63
        $region38: #{tpu_custom_call.1} parent=31 // pred_check_branch
          %192 = sbr.rel (%p190) target = $region40
        $region39: #{tpu_custom_call.1} parent=31 // pred_region
          %193 = dma.done [#allocation6], 8192
        $region40: #{tpu_custom_call.1} parent=31 // pred_fallthru
          _
        // Predicated region
        $region41: #{tpu_custom_call.1} parent=31 // pred_check
          %p194 = pneg %p84
        $region42: #{tpu_custom_call.1} parent=31 // pred_check_branch
          %196 = sbr.rel (%p194) target = $region44
        $region43: #{tpu_custom_call.1} parent=31 // pred_region
          %197 = dma.done [#allocation6], 4096
        $region44: #{tpu_custom_call.1} parent=31 // pred_fallthru
          _
        %s198 = sand.u32 %s29, 1
        %s199 = scalar_lea.sflag [#allocation3], %s198
        %s200 = sand.u32 %s29, 1
        %s201 = smul.addr %s200, 16
        %s202 = scalar_lea.vmem [#allocation2], %s201
        %p203 = pneg %p42
        %p204 = pneg %p39
        %p205 = pneg %p63
        %p206 = pneg %p60
        %p207 = pneg %p84
        %p208 = pneg %p81
        %p209 = pneg %p110
        %p210 = pneg %p107
        %s211 = sand.u32 %s97, 1
        %s212 = scalar_lea.sflag [#allocation4], %s211
        %s213 = sand.u32 %s97, 1
        %s214 = smul.addr %s213, 8
        %s215 = scalar_lea.vmem [#allocation8], %s214
        %v216 = vld [vmem:[%s185] sm:$0xff]
        %v217 = vld [vmem:[%s185 + $0x8] sm:$0xff]
        %v218 = vld [vmem:[#allocation5] sm:$0xff]
        %v219 = vld [vmem:[#allocation5 + $0x8] sm:$0xff]
        %v220 = vld [vmem:[#allocation5 + $0x10] sm:$0xff]
        %v221 = vld [vmem:[#allocation5 + $0x18] sm:$0xff]
        %v222 = vld [vmem:[#allocation5 + $0x20] sm:$0xff]
        %v223 = vld [vmem:[#allocation5 + $0x28] sm:$0xff]
        %v224 = vld [vmem:[#allocation5 + $0x30] sm:$0xff]
        %v225 = vld [vmem:[#allocation5 + $0x38] sm:$0xff]
        %v226 = vld [vmem:[#allocation5 + $0x40] sm:$0xff]
        %v227 = vld [vmem:[#allocation5 + $0x48] sm:$0xff]
        %v228 = vld [vmem:[#allocation5 + $0x50] sm:$0xff]
        %v229 = vld [vmem:[#allocation5 + $0x58] sm:$0xff]
        %v230 = vld [vmem:[#allocation5 + $0x60] sm:$0xff]
        %v231 = vld [vmem:[#allocation5 + $0x68] sm:$0xff]
        %v232 = vld [vmem:[#allocation5 + $0x70] sm:$0xff]
        %v233 = vld [vmem:[#allocation5 + $0x78] sm:$0xff]
        %v234 = vld [vmem:[#allocation5 + $0x80] sm:$0xff]
        %v235 = vld [vmem:[#allocation5 + $0x88] sm:$0xff]
        %v236 = vld [vmem:[#allocation5 + $0x90] sm:$0xff]
        %v237 = vld [vmem:[#allocation5 + $0x98] sm:$0xff]
        %v238 = vld [vmem:[#allocation5 + $0xa0] sm:$0xff]
        %v239 = vld [vmem:[#allocation5 + $0xa8] sm:$0xff]
        %v240 = vld [vmem:[#allocation5 + $0xb0] sm:$0xff]
        %v241 = vld [vmem:[#allocation5 + $0xb8] sm:$0xff]
        %v242 = vld [vmem:[#allocation5 + $0xc0] sm:$0xff]
        %v243 = vld [vmem:[#allocation5 + $0xc8] sm:$0xff]
        %v244 = vld [vmem:[#allocation5 + $0xd0] sm:$0xff]
        %v245 = vld [vmem:[#allocation5 + $0xd8] sm:$0xff]
        %v246 = vld [vmem:[#allocation5 + $0xe0] sm:$0xff]
        %v247 = vld [vmem:[#allocation5 + $0xe8] sm:$0xff]
        %v248 = vld [vmem:[#allocation5 + $0xf0] sm:$0xff]
        %v249 = vld [vmem:[#allocation5 + $0xf8] sm:$0xff]
        %v250 = vld [vmem:[#allocation5 + $0x100] sm:$0xff]
        %v251 = vld [vmem:[#allocation5 + $0x108] sm:$0xff]
        %v252 = vld [vmem:[#allocation5 + $0x110] sm:$0xff]
        %v253 = vld [vmem:[#allocation5 + $0x118] sm:$0xff]
        %v254 = vld [vmem:[#allocation5 + $0x120] sm:$0xff]
        %v255 = vld [vmem:[#allocation5 + $0x128] sm:$0xff]
        %v256 = vld [vmem:[#allocation5 + $0x130] sm:$0xff]
        %v257 = vld [vmem:[#allocation5 + $0x138] sm:$0xff]
        %v258 = vld [vmem:[#allocation5 + $0x140] sm:$0xff]
        %v259 = vld [vmem:[#allocation5 + $0x148] sm:$0xff]
        %v260 = vld [vmem:[#allocation5 + $0x150] sm:$0xff]
        %v261 = vld [vmem:[#allocation5 + $0x158] sm:$0xff]
        %v262 = vld [vmem:[#allocation5 + $0x160] sm:$0xff]
        %v263 = vld [vmem:[#allocation5 + $0x168] sm:$0xff]
        %v264 = vld [vmem:[#allocation5 + $0x170] sm:$0xff]
        %v265 = vld [vmem:[#allocation5 + $0x178] sm:$0xff]
        %v266 = vld [vmem:[#allocation5 + $0x180] sm:$0xff]
        %v267 = vld [vmem:[#allocation5 + $0x188] sm:$0xff]
        %v268 = vld [vmem:[#allocation5 + $0x190] sm:$0xff]
        %v269 = vld [vmem:[#allocation5 + $0x198] sm:$0xff]
        %v270 = vld [vmem:[#allocation5 + $0x1a0] sm:$0xff]
        %v271 = vld [vmem:[#allocation5 + $0x1a8] sm:$0xff]
        %v272 = vld [vmem:[#allocation5 + $0x1b0] sm:$0xff]
        %v273 = vld [vmem:[#allocation5 + $0x1b8] sm:$0xff]
        %v274 = vld [vmem:[#allocation5 + $0x1c0] sm:$0xff]
        %v275 = vld [vmem:[#allocation5 + $0x1c8] sm:$0xff]
        %v276 = vld [vmem:[#allocation5 + $0x1d0] sm:$0xff]
        %v277 = vld [vmem:[#allocation5 + $0x1d8] sm:$0xff]
        %v278 = vld [vmem:[#allocation5 + $0x1e0] sm:$0xff]
        %v279 = vld [vmem:[#allocation5 + $0x1e8] sm:$0xff]
        %v280 = vld [vmem:[#allocation5 + $0x1f0] sm:$0xff]
        %v281 = vld [vmem:[#allocation5 + $0x1f8] sm:$0xff]
        %282 = vmatprep.subr.mxu0 %v219
        %283 = vmatpush1.msra.mxu0 %v218
        %284 = vmatprep.subr.mxu0 %v221
        %285 = vmatpush1.msra.mxu0 %v220
        %286 = vmatprep.subr.mxu0 %v223
        %287 = vmatpush1.msra.mxu0 %v222
        %288 = vmatprep.subr.mxu0 %v225
        %289 = vmatpush1.msra.mxu0 %v224
        %290 = vmatprep.subr.mxu0 %v227
        %291 = vmatpush1.msra.mxu0 %v226
        %292 = vmatprep.subr.mxu0 %v229
        %293 = vmatpush1.msra.mxu0 %v228
        %294 = vmatprep.subr.mxu0 %v231
        %295 = vmatpush1.msra.mxu0 %v230
        %296 = vmatprep.subr.mxu0 %v233
        %297 = vmatpush1.msra.mxu0 %v232
        %298 = vmatprep.subr.mxu0 %v235
        %299 = vmatpush1.msra.mxu0 %v234
        %300 = vmatprep.subr.mxu0 %v237
        %301 = vmatpush1.msra.mxu0 %v236
        %302 = vmatprep.subr.mxu0 %v239
        %303 = vmatpush1.msra.mxu0 %v238
        %304 = vmatprep.subr.mxu0 %v241
        %305 = vmatpush1.msra.mxu0 %v240
        %306 = vmatprep.subr.mxu0 %v243
        %307 = vmatpush1.msra.mxu0 %v242
        %308 = vmatprep.subr.mxu0 %v245
        %309 = vmatpush1.msra.mxu0 %v244
        %310 = vmatprep.subr.mxu0 %v247
        %311 = vmatpush1.msra.mxu0 %v246
        %312 = vmatprep.subr.mxu0 %v249
        %313 = vmatpush1.msra.mxu0 %v248
        %314 = vmatprep.subr.mxu0 %v251
        %315 = vmatpush1.msra.mxu0 %v250
        %316 = vmatprep.subr.mxu0 %v253
        %317 = vmatpush1.msra.mxu0 %v252
        %318 = vmatprep.subr.mxu0 %v255
        %319 = vmatpush1.msra.mxu0 %v254
        %320 = vmatprep.subr.mxu0 %v257
        %321 = vmatpush1.msra.mxu0 %v256
        %322 = vmatprep.subr.mxu0 %v259
        %323 = vmatpush1.msra.mxu0 %v258
        %324 = vmatprep.subr.mxu0 %v261
        %325 = vmatpush1.msra.mxu0 %v260
        %326 = vmatprep.subr.mxu0 %v263
        %327 = vmatpush1.msra.mxu0 %v262
        %328 = vmatprep.subr.mxu0 %v265
        %329 = vmatpush1.msra.mxu0 %v264
        %330 = vmatprep.subr.mxu0 %v267
        %331 = vmatpush1.msra.mxu0 %v266
        %332 = vmatprep.subr.mxu0 %v269
        %333 = vmatpush1.msra.mxu0 %v268
        %334 = vmatprep.subr.mxu0 %v271
        %335 = vmatpush1.msra.mxu0 %v270
        %336 = vmatprep.subr.mxu0 %v273
        %337 = vmatpush1.msra.mxu0 %v272
        %338 = vmatprep.subr.mxu0 %v275
        %339 = vmatpush1.msra.mxu0 %v274
        %340 = vmatprep.subr.mxu0 %v277
        %341 = vmatpush1.msra.mxu0 %v276
        %342 = vmatprep.subr.mxu0 %v279
        %343 = vmatpush1.msra.mxu0 %v278
        %344 = vmatprep.subr.mxu0 %v281
        %345 = vmatpush1.msra.mxu0 %v280
        %346 = vmatprep.mubr.f32.mxu0 %v217
        %347 = vmatmul.mubr.f32.gmra.mrb[0].mxu0 %v216
        %v348 = vpop.f32.mrb[0].mxu0
        %v349 = vadd.f32 0.0, %v348
        %v350 = vpop.f32.mrb[0].mxu0
        %v351 = vadd.f32 0.0, %v350
        %352 = vdwg.mxu0
        %v353 = vmul.f32 %v216, %v349
        %v354 = vmul.f32 %v217, %v351
        %v355 = vld [vmem:[#allocation7] sm:$0xff]
        %v356 = vld [vmem:[#allocation7 + $0x8] sm:$0xff]
        %v357 = vld [vmem:[#allocation7 + $0x10] sm:$0xff]
        %v358 = vld [vmem:[#allocation7 + $0x18] sm:$0xff]
        %v359 = vld [vmem:[#allocation7 + $0x20] sm:$0xff]
        %v360 = vld [vmem:[#allocation7 + $0x28] sm:$0xff]
        %v361 = vld [vmem:[#allocation7 + $0x30] sm:$0xff]
        %v362 = vld [vmem:[#allocation7 + $0x38] sm:$0xff]
        %v363 = vld [vmem:[#allocation7 + $0x40] sm:$0xff]
        %v364 = vld [vmem:[#allocation7 + $0x48] sm:$0xff]
        %v365 = vld [vmem:[#allocation7 + $0x50] sm:$0xff]
        %v366 = vld [vmem:[#allocation7 + $0x58] sm:$0xff]
        %v367 = vld [vmem:[#allocation7 + $0x60] sm:$0xff]
        %v368 = vld [vmem:[#allocation7 + $0x68] sm:$0xff]
        %v369 = vld [vmem:[#allocation7 + $0x70] sm:$0xff]
        %v370 = vld [vmem:[#allocation7 + $0x78] sm:$0xff]
        %v371 = vld [vmem:[#allocation7 + $0x80] sm:$0xff]
        %v372 = vld [vmem:[#allocation7 + $0x88] sm:$0xff]
        %v373 = vld [vmem:[#allocation7 + $0x90] sm:$0xff]
        %v374 = vld [vmem:[#allocation7 + $0x98] sm:$0xff]
        %v375 = vld [vmem:[#allocation7 + $0xa0] sm:$0xff]
        %v376 = vld [vmem:[#allocation7 + $0xa8] sm:$0xff]
        %v377 = vld [vmem:[#allocation7 + $0xb0] sm:$0xff]
        %v378 = vld [vmem:[#allocation7 + $0xb8] sm:$0xff]
        %v379 = vld [vmem:[#allocation7 + $0xc0] sm:$0xff]
        %v380 = vld [vmem:[#allocation7 + $0xc8] sm:$0xff]
        %v381 = vld [vmem:[#allocation7 + $0xd0] sm:$0xff]
        %v382 = vld [vmem:[#allocation7 + $0xd8] sm:$0xff]
        %v383 = vld [vmem:[#allocation7 + $0xe0] sm:$0xff]
        %v384 = vld [vmem:[#allocation7 + $0xe8] sm:$0xff]
        %v385 = vld [vmem:[#allocation7 + $0xf0] sm:$0xff]
        %v386 = vld [vmem:[#allocation7 + $0xf8] sm:$0xff]
        %387 = vmatprep.subr.mxu0 0.0
        %388 = vmatpush1.msra.mxu0 %v355
        %389 = vmatprep.subr.mxu0 0.0
        %390 = vmatpush1.msra.mxu0 %v356
        %391 = vmatprep.subr.mxu0 0.0
        %392 = vmatpush1.msra.mxu0 %v357
        %393 = vmatprep.subr.mxu0 0.0
        %394 = vmatpush1.msra.mxu0 %v358
        %395 = vmatprep.subr.mxu0 0.0
        %396 = vmatpush1.msra.mxu0 %v359
        %397 = vmatprep.subr.mxu0 0.0
        %398 = vmatpush1.msra.mxu0 %v360
        %399 = vmatprep.subr.mxu0 0.0
        %400 = vmatpush1.msra.mxu0 %v361
        %401 = vmatprep.subr.mxu0 0.0
        %402 = vmatpush1.msra.mxu0 %v362
        %403 = vmatprep.subr.mxu0 0.0
        %404 = vmatpush1.msra.mxu0 %v363
        %405 = vmatprep.subr.mxu0 0.0
        %406 = vmatpush1.msra.mxu0 %v364
        %407 = vmatprep.subr.mxu0 0.0
        %408 = vmatpush1.msra.mxu0 %v365
        %409 = vmatprep.subr.mxu0 0.0
        %410 = vmatpush1.msra.mxu0 %v366
        %411 = vmatprep.subr.mxu0 0.0
        %412 = vmatpush1.msra.mxu0 %v367
        %413 = vmatprep.subr.mxu0 0.0
        %414 = vmatpush1.msra.mxu0 %v368
        %415 = vmatprep.subr.mxu0 0.0
        %416 = vmatpush1.msra.mxu0 %v369
        %417 = vmatprep.subr.mxu0 0.0
        %418 = vmatpush1.msra.mxu0 %v370
        %419 = vmatprep.subr.mxu0 0.0
        %420 = vmatpush1.msra.mxu0 %v371
        %421 = vmatprep.subr.mxu0 0.0
        %422 = vmatpush1.msra.mxu0 %v372
        %423 = vmatprep.subr.mxu0 0.0
        %424 = vmatpush1.msra.mxu0 %v373
        %425 = vmatprep.subr.mxu0 0.0
        %426 = vmatpush1.msra.mxu0 %v374
        %427 = vmatprep.subr.mxu0 0.0
        %428 = vmatpush1.msra.mxu0 %v375
        %429 = vmatprep.subr.mxu0 0.0
        %430 = vmatpush1.msra.mxu0 %v376
        %431 = vmatprep.subr.mxu0 0.0
        %432 = vmatpush1.msra.mxu0 %v377
        %433 = vmatprep.subr.mxu0 0.0
        %434 = vmatpush1.msra.mxu0 %v378
        %435 = vmatprep.subr.mxu0 0.0
        %436 = vmatpush1.msra.mxu0 %v379
        %437 = vmatprep.subr.mxu0 0.0
        %438 = vmatpush1.msra.mxu0 %v380
        %439 = vmatprep.subr.mxu0 0.0
        %440 = vmatpush1.msra.mxu0 %v381
        %441 = vmatprep.subr.mxu0 0.0
        %442 = vmatpush1.msra.mxu0 %v382
        %443 = vmatprep.subr.mxu0 0.0
        %444 = vmatpush1.msra.mxu0 %v383
        %445 = vmatprep.subr.mxu0 0.0
        %446 = vmatpush1.msra.mxu0 %v384
        %447 = vmatprep.subr.mxu0 0.0
        %448 = vmatpush1.msra.mxu0 %v385
        %449 = vmatprep.subr.mxu0 0.0
        %450 = vmatpush1.msra.mxu0 %v386
        %451 = vmatprep.mubr.f32.mxu0 %v354
        %452 = vmatmul.mubr.f32.gmra.mrb[0].mxu0 %v353
        %v453 = vpop.f32.mrb[0].mxu0
        %v454 = vadd.f32 0.0, %v453
        %v455 = vpop.f32.mrb[0].mxu0
        %456 = vdwg.mxu0
        %v457 = vtanh.pop %v454
        %458 = vst [vmem:[%s215] sm:$0xff] %v457
        %s459 = sand.u32 %s97, 1
        %s460 = scalar_lea.sflag [#allocation4], %s459
        %s461 = sand.u32 %s97, 1
        %s462 = smul.addr %s461, 8
        %s463 = scalar_lea.vmem [#allocation8], %s462
        // Predicated region
        $region45: #{tpu_custom_call.1} parent=31 // pred_check
          %p464 = pneg %p107
        $region46: #{tpu_custom_call.1} parent=31 // pred_check_branch
          %466 = sbr.rel (%p464) target = $region48
        $region47: #{tpu_custom_call.1} parent=31 // pred_region
          %s468 = ssub.s32 128, 128
          %469 = vsyncadd %s460, %s468
          %s470 = smul.addr %s21, 128
          %s471 = scalar_lea.hbm %s3, %s470
          %s473 = sshll.u32 %s463, 4
          %s474 = int_to_ptr.vmem [resolvable:$true] %s473
          %476 = dma.vmem_to_hbm [thread:$0]  %s474, 128, %s471, %s460
        $region48: #{tpu_custom_call.1} parent=31 // pred_fallthru
          _
      $region32: #{tpu_custom_call.1} parent=5 // pred_fallthru
        _
      %p477 = scmp.le.s32.totalorder 2, %s16
      // Predicated region
      $region49: #{tpu_custom_call.1} parent=5 // pred_check
        %p478 = pneg %p477
      $region50: #{tpu_custom_call.1} parent=5 // pred_check_branch
        %480 = sbr.rel (%p478) target = $region52
      $region51: #{tpu_custom_call.1} parent=5 // pred_region
        %s481 = ssub.s32 %s16, 2
        // Predicated region
        $region53: #{tpu_custom_call.1} parent=51 // pred_check
          %p482 = pneg %p113
        $region54: #{tpu_custom_call.1} parent=51 // pred_check_branch
          %484 = sbr.rel (%p482) target = $region56
        $region55: #{tpu_custom_call.1} parent=51 // pred_region
          %s485 = sand.u32 %s98, 1
          %s486 = scalar_lea.sflag [#allocation4], %s485
          %s487 = sand.u32 %s98, 1
          %s488 = smul.addr %s487, 8
          %s489 = scalar_lea.vmem [#allocation8], %s488
          %490 = dma.done %s486, 128
        $region56: #{tpu_custom_call.1} parent=51 // pred_fallthru
          _
      $region52: #{tpu_custom_call.1} parent=5 // pred_fallthru
        _
    $region6: #{tpu_custom_call.1} parent=1 // loop_footer
      %s20 = sadd.s32 1, %s16
    $region7: #{tpu_custom_call.1} parent=1 // loop_footer_branch
      %15 = sbr.rel target = $region3
    $region8: #{tpu_custom_call.1} parent=1 // loop_exit
      _
    %491 = vsyncpa [#allocation3], 1
    %s492 = scalar_lea.sflag [#allocation3], 1
    %493 = vsyncpa %s492, 1
    %494 = vsyncpa [#allocation6], 1
    %495 = vsyncpa [#allocation4], 1
    %s496 = scalar_lea.sflag [#allocation4], 1
    %497 = vsyncpa %s496, 1

</llo_original>
